<compile_context>
chip_gen: v7x
topology: tpu7x:2x2x1
jax: 0.10.0
libtpu: 0.0.40
codegen_flags: <defaults>
</compile_context>

<pallas_src>
import jax
import jax.numpy as jnp
from jax.experimental import pallas as pl
from jax.experimental.pallas import tpu as pltpu

IN_F = 28 * 28     # 784
H_PAD = 256        # hidden 200 padded to 256 (MXU-friendly)
OUT_PAD = 128      # output 10 padded to 128 (lane-dense stores)
OUT_F = 10


def mlp_kernel(x_ref, w1_ref, b1_ref, w2_ref, b2_ref, w3_ref, b3_ref, o_ref):
    # x_ref: (TB, 784) f32 (cast to bf16 in-kernel); weights bf16 (in, out)
    # padded; biases f32 (1, out); o_ref: (TB, 128) bf16.
    x = x_ref[...].astype(jnp.bfloat16)

    # Layer 1: linear + ReLU (f32 accumulation on MXU).
    h1 = jnp.dot(x, w1_ref[...], preferred_element_type=jnp.float32)
    h1 = jnp.maximum(h1 + b1_ref[...], 0.0)

    # Layer 2: linear + ReLU.
    h2 = jnp.dot(h1.astype(jnp.bfloat16), w2_ref[...],
                 preferred_element_type=jnp.float32)
    h2 = jnp.maximum(h2 + b2_ref[...], 0.0)

    # Layer 3: linear (no activation). Padded output cols are exactly zero
    # because the padded weight cols / bias entries are zero.
    out = jnp.dot(h2.astype(jnp.bfloat16), w3_ref[...],
                  preferred_element_type=jnp.float32) + b3_ref[...]

    o_ref[...] = out.astype(o_ref.dtype)


def _round_up(v, m):
    return (v + m - 1) // m * m


def _choose_tb(B):
    """Batch-tile heuristic (B is a static shape -> pure Python).

    - Small batches: one tile, rounded to a multiple of 16 (bf16 (16,128)
      sublane packing; also satisfies f32 (8,128)).
    - Large batches: aim for >=8 tiles (v7x megacore sharding + pipelining),
      capped at TB=1024 (~86% of HBM roofline; working set ~10 MiB at f32 x,
      well under the 48 MiB vmem limit we request below and v7x's 64 MiB).
    """
    if B <= 256:
        return _round_up(B, 16)
    return min(1024, _round_up(pl.cdiv(B, 8), 256))


def _pad2d(a, rows, cols):
    return jnp.pad(a, ((0, rows - a.shape[0]), (0, cols - a.shape[1])))


def prepare_params(params, masks=None):
    """One-time conversion of PyTorch-layout params (out, in) into the kernel
    layout: (optionally masked, == MaskedLinear.set_mask), transposed to
    (in, out), zero-padded to MXU-friendly widths, cast to bf16 (biases f32).
    Call this OUTSIDE the hot path."""
    (w1, b1), (w2, b2), (w3, b3) = params
    if masks is not None:
        m1, m2, m3 = masks
        w1, w2, w3 = w1 * m1, w2 * m2, w3 * m3
    w1p = _pad2d(w1.T, IN_F, H_PAD).astype(jnp.bfloat16)             # (784, 256)
    w2p = _pad2d(w2.T, H_PAD, H_PAD).astype(jnp.bfloat16)            # (256, 256)
    w3p = _pad2d(w3.T, H_PAD, OUT_PAD).astype(jnp.bfloat16)          # (256, 128)
    b1p = _pad2d(b1.reshape(1, -1), 1, H_PAD).astype(jnp.float32)    # (1, 256)
    b2p = _pad2d(b2.reshape(1, -1), 1, H_PAD).astype(jnp.float32)    # (1, 256)
    b3p = _pad2d(b3.reshape(1, -1), 1, OUT_PAD).astype(jnp.float32)  # (1, 128)
    return (w1p, b1p, w2p, b2p, w3p, b3p)


@jax.jit
def mlp_forward(x, prepared):
    """x: (B, 1, 28, 28) or (B, 784) float32. Returns (B, 10) float32."""
    w1p, b1p, w2p, b2p, w3p, b3p = prepared
    B = x.shape[0]
    # Glue for x.view(x.size(0), -1). Stays f32: no wrapper cast pass, no pad
    # pass; the kernel casts and the grid handles the ragged last tile.
    x2d = x.reshape(B, -1)

    TB = _choose_tb(B)
    grid = (pl.cdiv(B, TB),)

    out = pl.pallas_call(
        mlp_kernel,
        out_shape=jax.ShapeDtypeStruct((B, OUT_PAD), jnp.bfloat16),
        grid_spec=pltpu.PrefetchScalarGridSpec(
            num_scalar_prefetch=0,
            grid=grid,
            in_specs=[
                # Activation stream: pipelined over batch tiles (ragged last
                # tile: OOB rows are undefined on read but there is no
                # cross-row op, and OOB rows are never written back).
                # If a trace shows exposed input DMA on v6e at TB=1024, add
                # pipeline_mode=pl.Buffered(3) here.
                pl.BlockSpec((TB, IN_F), lambda i: (i, 0)),
                # Weights / biases: constant block index -> resident in VMEM.
                pl.BlockSpec((IN_F, H_PAD), lambda i: (0, 0)),
                pl.BlockSpec((1, H_PAD), lambda i: (0, 0)),
                pl.BlockSpec((H_PAD, H_PAD), lambda i: (0, 0)),
                pl.BlockSpec((1, H_PAD), lambda i: (0, 0)),
                pl.BlockSpec((H_PAD, OUT_PAD), lambda i: (0, 0)),
                pl.BlockSpec((1, OUT_PAD), lambda i: (0, 0)),
            ],
            out_specs=pl.BlockSpec((TB, OUT_PAD), lambda i: (i, 0)),
        ),
        compiler_params=pltpu.CompilerParams(
            # Batch tiles are independent -> megacore-shard on v7x.
            dimension_semantics=("parallel",),
            # Headroom for TB=1024 with f32 x (~10 MiB working set) on v5e's
            # 16 MiB scoped default; still < v7x's 64 MiB physical VMEM.
            vmem_limit_bytes=48 * 1024 * 1024,
        ),
    )(x2d, w1p, b1p, w2p, b2p, w3p, b3p)

    # Cheap: slice the 10 real logits and upcast (bf16 writeback halves the
    # kernel's HBM write traffic).
    return out[:, :OUT_F].astype(jnp.float32)


def init_params(key):
    """Deterministic init matching PyTorch nn.Linear default:
    U(-1/sqrt(fan_in), 1/sqrt(fan_in)) for both weight (out, in) and bias."""
    dims = [(IN_F, 200), (200, 200), (200, OUT_F)]
    params = []
    for (fan_in, fan_out) in dims:
        key, kw, kb = jax.random.split(key, 3)
        bound = 1.0 / jnp.sqrt(fan_in)
        w = jax.random.uniform(kw, (fan_out, fan_in), jnp.float32, -bound, bound)
        b = jax.random.uniform(kb, (fan_out,), jnp.float32, -bound, bound)
        params.append((w, b))
    return params


def reference_forward(x, params):
    (w1, b1), (w2, b2), (w3, b3) = params
    out = x.reshape(x.shape[0], -1)
    out = jnp.maximum(out @ w1.T + b1, 0.0)
    out = jnp.maximum(out @ w2.T + b2, 0.0)
    out = out @ w3.T + b3
    return out


if __name__ == "__main__":
    key = jax.random.PRNGKey(0)
    kx, kp = jax.random.split(key)

    # Small batch of MNIST-shaped inputs (NCHW), as the PyTorch module expects.
    x = jax.random.normal(kx, (2, 1, 28, 28), dtype=jnp.float32)
    params = init_params(kp)
    prepared = prepare_params(params)   # one-time: transpose + pad + bf16 cast

    out = mlp_forward(x, prepared)
    out = jax.block_until_ready(out)

    ref = reference_forward(x, params)
    assert out.shape == (2, 10)
    # bf16 weights/activations/output with f32 accumulation: ~1e-2-scale
    # deviation vs the f32 reference is expected.
    max_err = float(jnp.max(jnp.abs(out - ref)))
    assert jnp.allclose(out, ref, atol=1e-1, rtol=1e-1), (
        f"mismatch vs reference, max abs err {max_err}")

    print("KERNEL_OK")
</pallas_src>

<mosaic_0001>
module attributes {stable_mosaic.version = 11 : i64} {
  func.func @mlp_kernel(%arg0: i32, %arg1: memref<16x784xf32, #tpu.memory_space<vmem>>, %arg2: memref<784x256xbf16, #tpu.memory_space<vmem>>, %arg3: memref<1x256xf32, #tpu.memory_space<vmem>>, %arg4: memref<256x256xbf16, #tpu.memory_space<vmem>>, %arg5: memref<1x256xf32, #tpu.memory_space<vmem>>, %arg6: memref<256x128xbf16, #tpu.memory_space<vmem>>, %arg7: memref<1x128xf32, #tpu.memory_space<vmem>>, %arg8: memref<16x128xbf16, #tpu.memory_space<vmem>>) attributes {dimension_semantics = [#tpu.dimension_semantics<parallel>], iteration_bounds = array<i64: 1>, scalar_prefetch = 0 : i64, scratch_operands = 0 : i64, tpu.core_type = #tpu.core_type<tc>, window_params = [{transform_indices = @transform_0, window_bounds = array<i64: 16, 784>}, {pipeline_mode = #tpu.pipeline_mode<synchronous>, transform_indices = @transform_1, window_bounds = array<i64: 784, 256>}, {pipeline_mode = #tpu.pipeline_mode<synchronous>, transform_indices = @transform_2, window_bounds = array<i64: 1, 256>}, {pipeline_mode = #tpu.pipeline_mode<synchronous>, transform_indices = @transform_3, window_bounds = array<i64: 256, 256>}, {pipeline_mode = #tpu.pipeline_mode<synchronous>, transform_indices = @transform_4, window_bounds = array<i64: 1, 256>}, {pipeline_mode = #tpu.pipeline_mode<synchronous>, transform_indices = @transform_5, window_bounds = array<i64: 256, 128>}, {pipeline_mode = #tpu.pipeline_mode<synchronous>, transform_indices = @transform_6, window_bounds = array<i64: 1, 128>}, {transform_indices = @transform_7, window_bounds = array<i64: 16, 128>}]} {
    %c0 = arith.constant 0 : index
    %c0_0 = arith.constant 0 : index
    %0 = vector.load %arg1[%c0, %c0_0] : memref<16x784xf32, #tpu.memory_space<vmem>>, vector<16x784xf32>
    %1 = arith.truncf %0 : vector<16x784xf32> to vector<16x784xbf16>
    %c0_1 = arith.constant 0 : index
    %c0_2 = arith.constant 0 : index
    %2 = vector.load %arg2[%c0_1, %c0_2] : memref<784x256xbf16, #tpu.memory_space<vmem>>, vector<784x256xbf16>
    %cst = arith.constant dense<0.000000e+00> : vector<16x256xf32>
    %3 = tpu.matmul %1, %2, %cst {dimension_numbers = #tpu.dot_dimension_numbers<[1], [0], [0], [1], [0, 0, 1, 1], [], []>} : vector<16x784xbf16>, vector<784x256xbf16>, vector<16x256xf32> -> vector<16x256xf32>
    %c0_3 = arith.constant 0 : index
    %c0_4 = arith.constant 0 : index
    %4 = vector.load %arg3[%c0_3, %c0_4] : memref<1x256xf32, #tpu.memory_space<vmem>>, vector<1x256xf32>
    %5 = vector.broadcast %4 : vector<1x256xf32> to vector<16x256xf32>
    %6 = arith.addf %3, %5 : vector<16x256xf32>
    %cst_5 = arith.constant 0.000000e+00 : f32
    %7 = vector.broadcast %cst_5 : f32 to vector<16x256xf32>
    %8 = arith.maximumf %6, %7 : vector<16x256xf32>
    %9 = arith.truncf %8 : vector<16x256xf32> to vector<16x256xbf16>
    %c0_6 = arith.constant 0 : index
    %c0_7 = arith.constant 0 : index
    %10 = vector.load %arg4[%c0_6, %c0_7] : memref<256x256xbf16, #tpu.memory_space<vmem>>, vector<256x256xbf16>
    %cst_8 = arith.constant dense<0.000000e+00> : vector<16x256xf32>
    %11 = tpu.matmul %9, %10, %cst_8 {dimension_numbers = #tpu.dot_dimension_numbers<[1], [0], [0], [1], [0, 0, 1, 1], [], []>} : vector<16x256xbf16>, vector<256x256xbf16>, vector<16x256xf32> -> vector<16x256xf32>
    %c0_9 = arith.constant 0 : index
    %c0_10 = arith.constant 0 : index
    %12 = vector.load %arg5[%c0_9, %c0_10] : memref<1x256xf32, #tpu.memory_space<vmem>>, vector<1x256xf32>
    %13 = vector.broadcast %12 : vector<1x256xf32> to vector<16x256xf32>
    %14 = arith.addf %11, %13 : vector<16x256xf32>
    %cst_11 = arith.constant 0.000000e+00 : f32
    %15 = vector.broadcast %cst_11 : f32 to vector<16x256xf32>
    %16 = arith.maximumf %14, %15 : vector<16x256xf32>
    %17 = arith.truncf %16 : vector<16x256xf32> to vector<16x256xbf16>
    %c0_12 = arith.constant 0 : index
    %c0_13 = arith.constant 0 : index
    %18 = vector.load %arg6[%c0_12, %c0_13] : memref<256x128xbf16, #tpu.memory_space<vmem>>, vector<256x128xbf16>
    %cst_14 = arith.constant dense<0.000000e+00> : vector<16x128xf32>
    %19 = tpu.matmul %17, %18, %cst_14 {dimension_numbers = #tpu.dot_dimension_numbers<[1], [0], [0], [1], [0, 0, 1, 1], [], []>} : vector<16x256xbf16>, vector<256x128xbf16>, vector<16x128xf32> -> vector<16x128xf32>
    %c0_15 = arith.constant 0 : index
    %c0_16 = arith.constant 0 : index
    %20 = vector.load %arg7[%c0_15, %c0_16] : memref<1x128xf32, #tpu.memory_space<vmem>>, vector<1x128xf32>
    %21 = vector.broadcast %20 : vector<1x128xf32> to vector<16x128xf32>
    %22 = arith.addf %19, %21 : vector<16x128xf32>
    %23 = arith.truncf %22 : vector<16x128xf32> to vector<16x128xbf16>
    %c0_17 = arith.constant 0 : index
    %c0_18 = arith.constant 0 : index
    %24 = vector.load %arg8[%c0_17, %c0_18] : memref<16x128xbf16, #tpu.memory_space<vmem>>, vector<16x128xbf16>
    tpu.vector_store %arg8[%c0_17, %c0_18], %23 {strides = array<i32>} : memref<16x128xbf16, #tpu.memory_space<vmem>>, vector<16x128xbf16>,
    return
  }
  func.func @transform_0(%arg0: i32) -> (i32, i32) {
    %c0_i32 = arith.constant 0 : i32
    %c0_i32_0 = arith.constant 0 : i32
    return %arg0, %c0_i32 : i32, i32
  }
  func.func @transform_1(%arg0: i32) -> (i32, i32) {
    %c0_i32 = arith.constant 0 : i32
    %c0_i32_0 = arith.constant 0 : i32
    %c0_i32_1 = arith.constant 0 : i32
    return %c0_i32, %c0_i32_0 : i32, i32
  }
  func.func @transform_2(%arg0: i32) -> (i32, i32) {
    %c0_i32 = arith.constant 0 : i32
    %c0_i32_0 = arith.constant 0 : i32
    %c0_i32_1 = arith.constant 0 : i32
    return %c0_i32, %c0_i32_0 : i32, i32
  }
  func.func @transform_3(%arg0: i32) -> (i32, i32) {
    %c0_i32 = arith.constant 0 : i32
    %c0_i32_0 = arith.constant 0 : i32
    %c0_i32_1 = arith.constant 0 : i32
    return %c0_i32, %c0_i32_0 : i32, i32
  }
  func.func @transform_4(%arg0: i32) -> (i32, i32) {
    %c0_i32 = arith.constant 0 : i32
    %c0_i32_0 = arith.constant 0 : i32
    %c0_i32_1 = arith.constant 0 : i32
    return %c0_i32, %c0_i32_0 : i32, i32
  }
  func.func @transform_5(%arg0: i32) -> (i32, i32) {
    %c0_i32 = arith.constant 0 : i32
    %c0_i32_0 = arith.constant 0 : i32
    %c0_i32_1 = arith.constant 0 : i32
    return %c0_i32, %c0_i32_0 : i32, i32
  }
  func.func @transform_6(%arg0: i32) -> (i32, i32) {
    %c0_i32 = arith.constant 0 : i32
    %c0_i32_0 = arith.constant 0 : i32
    %c0_i32_1 = arith.constant 0 : i32
    return %c0_i32, %c0_i32_0 : i32, i32
  }
  func.func @transform_7(%arg0: i32) -> (i32, i32) {
    %c0_i32 = arith.constant 0 : i32
    %c0_i32_0 = arith.constant 0 : i32
    return %arg0, %c0_i32 : i32, i32
  }
}

</mosaic_0001>

<llo_original>
// kernel: mlp_forward.1
$region0: #{mlp_forward.1}
  #allocation0 [shape = 'u32[]', space=smem, size = 0x4, offset = 0x4, fixed_abs, tag = 'smem constant byte address 0x4 - core index']
  #allocation1 [shape = 'u32[144,128]{1,0:T(1,128)}', space=vmem, size = 0x12000, scoped, tag = 'internal scratch']
  %s0 = inlined_call_operand.vmem [shape: f32[2,784], index: 0, kind: input, shape index: {}]
  %s1 = inlined_call_operand.hbm [shape: bf16[784,256], index: 1, kind: input, shape index: {}]
  %s2 = inlined_call_operand.vmem [shape: f32[1,256], index: 2, kind: input, shape index: {}]
  %s3 = inlined_call_operand.hbm [shape: bf16[256,256], index: 3, kind: input, shape index: {}]
  %s4 = inlined_call_operand.vmem [shape: f32[1,256], index: 4, kind: input, shape index: {}]
  %s5 = inlined_call_operand.vmem [shape: bf16[256,128], index: 5, kind: input, shape index: {}]
  %s6 = inlined_call_operand.vmem [shape: f32[1,128], index: 6, kind: input, shape index: {}]
  %s7 = inlined_call_operand.vmem [shape: bf16[2,128], index: 7, kind: output, shape index: {}]
  %s8 = sld [smem:[#allocation0]]
  $region76: #{mlp_forward.1} parent=0
    _
  %s10 = ssub.s32 1, %s8
  %s11 = scalar_select 0, %s10, %s8
  $region1: #{mlp_forward.1} parent=0
    #allocation2 [shape = 'u8[401408]{0}', space=vmem, size = 0x62000, scoped, tag = 'input window, operand 1, single buffered']
    #allocation3 [shape = 's32[1]{0}', space=sflag, size = 0x4, scoped, tag = 'scoped memory for mlp_forward.1']
    #allocation4 [shape = 'u8[131072]{0}', space=vmem, size = 0x20000, scoped, tag = 'input window, operand 3, single buffered']
    #allocation5 [shape = 's32[1]{0}', space=sflag, size = 0x4, scoped, tag = 'scoped memory for mlp_forward.1']
    #allocation6 [shape = 'u8[4096]{0}', space=vmem, size = 0x1000, scoped, tag = 'output window, operand 0, single buffered']
    %12 = vsyncpa [#allocation3], 0
    %13 = vsyncpa [#allocation5], 0
    // Predicated region
    $region2: #{mlp_forward.1} parent=1 // pred_check
      _
    $region3: #{mlp_forward.1} parent=1 // pred_check_branch
      %15 = sbr.rel (0) target = $region5
    $region4: #{mlp_forward.1} parent=1 // pred_region
      _
    $region5: #{mlp_forward.1} parent=1 // pred_fallthru
      _
    // Predicated region
    $region6: #{mlp_forward.1} parent=1 // pred_check
      _
    $region7: #{mlp_forward.1} parent=1 // pred_check_branch
      %17 = sbr.rel (0) target = $region9
    $region8: #{mlp_forward.1} parent=1 // pred_region
      %s19 = ssub.s32 12544, 12544
      %20 = vsyncadd [#allocation3], %s19
      %s21 = sshll.u32 [#allocation2], 4
      %s22 = int_to_ptr.vmem [resolvable:$true] %s21
      %27 = dma.hbm_to_vmem [thread:$0]  %s1, 12544, %s22, [#allocation3], 128, 128, 8
    $region9: #{mlp_forward.1} parent=1 // pred_fallthru
      _
    // Predicated region
    $region10: #{mlp_forward.1} parent=1 // pred_check
      _
    $region11: #{mlp_forward.1} parent=1 // pred_check_branch
      %29 = sbr.rel (0) target = $region13
    $region12: #{mlp_forward.1} parent=1 // pred_region
      _
    $region13: #{mlp_forward.1} parent=1 // pred_fallthru
      _
    // Predicated region
    $region14: #{mlp_forward.1} parent=1 // pred_check
      _
    $region15: #{mlp_forward.1} parent=1 // pred_check_branch
      %31 = sbr.rel (0) target = $region17
    $region16: #{mlp_forward.1} parent=1 // pred_region
      %s33 = ssub.s32 4096, 4096
      %34 = vsyncadd [#allocation5], %s33
      %s35 = sshll.u32 [#allocation4], 4
      %s36 = int_to_ptr.vmem [resolvable:$true] %s35
      %41 = dma.hbm_to_vmem [thread:$0]  %s3, 4096, %s36, [#allocation5], 128, 128, 8
    $region17: #{mlp_forward.1} parent=1 // pred_fallthru
      _
    // Predicated region
    $region18: #{mlp_forward.1} parent=1 // pred_check
      _
    $region19: #{mlp_forward.1} parent=1 // pred_check_branch
      %43 = sbr.rel (0) target = $region21
    $region20: #{mlp_forward.1} parent=1 // pred_region
      _
    $region21: #{mlp_forward.1} parent=1 // pred_fallthru
      _
    // Predicated region
    $region22: #{mlp_forward.1} parent=1 // pred_check
      _
    $region23: #{mlp_forward.1} parent=1 // pred_check_branch
      %45 = sbr.rel (0) target = $region25
    $region24: #{mlp_forward.1} parent=1 // pred_region
      _
    $region25: #{mlp_forward.1} parent=1 // pred_fallthru
      _
    // Predicated region
    $region26: #{mlp_forward.1} parent=1 // pred_check
      _
    $region27: #{mlp_forward.1} parent=1 // pred_check_branch
      %47 = sbr.rel (0) target = $region29
    $region28: #{mlp_forward.1} parent=1 // pred_region
      _
    $region29: #{mlp_forward.1} parent=1 // pred_fallthru
      _
    // Predicated region
    $region30: #{mlp_forward.1} parent=1 // pred_check
      _
    $region31: #{mlp_forward.1} parent=1 // pred_check_branch
      %49 = sbr.rel (0) target = $region33
    $region32: #{mlp_forward.1} parent=1 // pred_region
      %50 = dma.done [#allocation3], 12544
    $region33: #{mlp_forward.1} parent=1 // pred_fallthru
      _
    // Predicated region
    $region34: #{mlp_forward.1} parent=1 // pred_check
      _
    $region35: #{mlp_forward.1} parent=1 // pred_check_branch
      %52 = sbr.rel (0) target = $region37
    $region36: #{mlp_forward.1} parent=1 // pred_region
      %53 = dma.done [#allocation5], 4096
    $region37: #{mlp_forward.1} parent=1 // pred_fallthru
      _
    %v55 = vld [vmem:[%s0] sm:$0xff]
    %v56 = vld [vmem:[%s0 + $0x8] sm:$0x3f]
    %v57 = vld [vmem:[%s0 + $0xe] sm:$0xff]
    %v58 = vld [vmem:[%s0 + $0x16] sm:$0x3f]
    %v59 = vld [vmem:[%s0 + $0x1c] sm:$0xff]
    %v60 = vld [vmem:[%s0 + $0x24] sm:$0x3f]
    %v61 = vld [vmem:[%s0 + $0x2a] sm:$0xff]
    %v62 = vld [vmem:[%s0 + $0x32] sm:$0x3f]
    %v63 = vld [vmem:[%s0 + $0x38] sm:$0xff]
    %v64 = vld [vmem:[%s0 + $0x40] sm:$0x3f]
    %v65 = vld [vmem:[%s0 + $0x46] sm:$0xff]
    %v66 = vld [vmem:[%s0 + $0x4e] sm:$0x3f]
    %v67 = vld [vmem:[%s0 + $0x54] sm:$0xff]
    %v68 = vld [vmem:[%s0 + $0x5c] sm:$0x3f]
    %v69 = vld [vmem:[%s0 + $0x62] sm:$0xff]
    %v70 = vld [vmem:[%s0 + $0x6a] sm:$0x3f]
    %v87 = vcombine.low %v55, %v57
    %v88 = vcombine.high %v55, %v57
    %v89 = vcombine.low %v59, %v61
    %v90 = vcombine.high %v59, %v61
    %v92 = vunpack.c.l.s4 1983009808
    %v93 = vunpack.c.0.s8 %v92
    %v94 = vlaneseq
    %v95 = vshrl.u32 %v94, 7
    %v96 = vsub.s32 %v93, %v95
    %v97 = vrot.slane %v87, %v96
    %v99 = vunpack.c.l.s4 1983009808
    %v100 = vunpack.c.0.s8 %v99
    %v101 = vlaneseq
    %v102 = vshrl.u32 %v101, 7
    %v103 = vsub.s32 %v100, %v102
    %v104 = vrot.slane %v88, %v103
    %v106 = vunpack.c.l.s4 1983009808
    %v107 = vunpack.c.0.s8 %v106
    %v108 = vlaneseq
    %v109 = vshrl.u32 %v108, 7
    %v110 = vsub.s32 %v107, %v109
    %v111 = vrot.slane %v89, %v110
    %v113 = vunpack.c.l.s4 1983009808
    %v114 = vunpack.c.0.s8 %v113
    %v115 = vlaneseq
    %v116 = vshrl.u32 %v115, 7
    %v117 = vsub.s32 %v114, %v116
    %v118 = vrot.slane %v90, %v117
    %v119 = vcombine.low %v97, %v111
    %v120 = vcombine.high %v97, %v111
    %v121 = vcombine.low %v104, %v118
    %v122 = vcombine.high %v104, %v118
    %v123 = vcombine.low %v56, %v58
    %v124 = vcombine.high %v56, %v58
    %v125 = vcombine.low %v60, %v62
    %v126 = vcombine.high %v60, %v62
    %v128 = vunpack.c.l.s4 1983009808
    %v129 = vunpack.c.0.s8 %v128
    %v130 = vlaneseq
    %v131 = vshrl.u32 %v130, 7
    %v132 = vsub.s32 %v129, %v131
    %v133 = vrot.slane %v123, %v132
    %v135 = vunpack.c.l.s4 1983009808
    %v136 = vunpack.c.0.s8 %v135
    %v137 = vlaneseq
    %v138 = vshrl.u32 %v137, 7
    %v139 = vsub.s32 %v136, %v138
    %v140 = vrot.slane %v124, %v139
    %v142 = vunpack.c.l.s4 1983009808
    %v143 = vunpack.c.0.s8 %v142
    %v144 = vlaneseq
    %v145 = vshrl.u32 %v144, 7
    %v146 = vsub.s32 %v143, %v145
    %v147 = vrot.slane %v125, %v146
    %v149 = vunpack.c.l.s4 1983009808
    %v150 = vunpack.c.0.s8 %v149
    %v151 = vlaneseq
    %v152 = vshrl.u32 %v151, 7
    %v153 = vsub.s32 %v150, %v152
    %v154 = vrot.slane %v126, %v153
    %v155 = vcombine.low %v133, %v147
    %v156 = vcombine.high %v133, %v147
    %v157 = vcombine.low %v140, %v154
    %v158 = vcombine.low %v63, %v65
    %v159 = vcombine.high %v63, %v65
    %v160 = vcombine.low %v67, %v69
    %v161 = vcombine.high %v67, %v69
    %v163 = vunpack.c.l.s4 1983009808
    %v164 = vunpack.c.0.s8 %v163
    %v165 = vlaneseq
    %v166 = vshrl.u32 %v165, 7
    %v167 = vsub.s32 %v164, %v166
    %v168 = vrot.slane %v158, %v167
    %v170 = vunpack.c.l.s4 1983009808
    %v171 = vunpack.c.0.s8 %v170
    %v172 = vlaneseq
    %v173 = vshrl.u32 %v172, 7
    %v174 = vsub.s32 %v171, %v173
    %v175 = vrot.slane %v159, %v174
    %v177 = vunpack.c.l.s4 1983009808
    %v178 = vunpack.c.0.s8 %v177
    %v179 = vlaneseq
    %v180 = vshrl.u32 %v179, 7
    %v181 = vsub.s32 %v178, %v180
    %v182 = vrot.slane %v160, %v181
    %v184 = vunpack.c.l.s4 1983009808
    %v185 = vunpack.c.0.s8 %v184
    %v186 = vlaneseq
    %v187 = vshrl.u32 %v186, 7
    %v188 = vsub.s32 %v185, %v187
    %v189 = vrot.slane %v161, %v188
    %v190 = vcombine.low %v168, %v182
    %v191 = vcombine.high %v168, %v182
    %v192 = vcombine.low %v175, %v189
    %v193 = vcombine.high %v175, %v189
    %v194 = vcombine.low %v64, %v66
    %v195 = vcombine.high %v64, %v66
    %v196 = vcombine.low %v68, %v70
    %v197 = vcombine.high %v68, %v70
    %v199 = vunpack.c.l.s4 1983009808
    %v200 = vunpack.c.0.s8 %v199
    %v201 = vlaneseq
    %v202 = vshrl.u32 %v201, 7
    %v203 = vsub.s32 %v200, %v202
    %v204 = vrot.slane %v194, %v203
    %v206 = vunpack.c.l.s4 1983009808
    %v207 = vunpack.c.0.s8 %v206
    %v208 = vlaneseq
    %v209 = vshrl.u32 %v208, 7
    %v210 = vsub.s32 %v207, %v209
    %v211 = vrot.slane %v195, %v210
    %v213 = vunpack.c.l.s4 1983009808
    %v214 = vunpack.c.0.s8 %v213
    %v215 = vlaneseq
    %v216 = vshrl.u32 %v215, 7
    %v217 = vsub.s32 %v214, %v216
    %v218 = vrot.slane %v196, %v217
    %v220 = vunpack.c.l.s4 1983009808
    %v221 = vunpack.c.0.s8 %v220
    %v222 = vlaneseq
    %v223 = vshrl.u32 %v222, 7
    %v224 = vsub.s32 %v221, %v223
    %v225 = vrot.slane %v197, %v224
    %v226 = vcombine.low %v204, %v218
    %v227 = vcombine.high %v204, %v218
    %v228 = vcombine.low %v211, %v225
    %v243 = vpack.c.bf16 %v190, %v119
    %v244 = vpack.c.bf16 %v191, %v120
    %v245 = vpack.c.bf16 %v192, %v121
    %v246 = vpack.c.bf16 %v193, %v122
    %v247 = vpack.c.bf16 %v226, %v155
    %v248 = vpack.c.bf16 %v227, %v156
    %v249 = vpack.c.bf16 %v228, %v157
    %v250 = vld [vmem:[#allocation2] sm:$0xff]
    %v251 = vld [vmem:[#allocation2 + $0x8] sm:$0xff]
    %v252 = vld [vmem:[#allocation2 + $0x10] sm:$0xff]
    %v253 = vld [vmem:[#allocation2 + $0x18] sm:$0xff]
    %v254 = vld [vmem:[#allocation2 + $0x20] sm:$0xff]
    %v255 = vld [vmem:[#allocation2 + $0x28] sm:$0xff]
    %v256 = vld [vmem:[#allocation2 + $0x30] sm:$0xff]
    %v257 = vld [vmem:[#allocation2 + $0x38] sm:$0xff]
    %v258 = vld [vmem:[#allocation2 + $0x40] sm:$0xff]
    %v259 = vld [vmem:[#allocation2 + $0x48] sm:$0xff]
    %v260 = vld [vmem:[#allocation2 + $0x50] sm:$0xff]
    %v261 = vld [vmem:[#allocation2 + $0x58] sm:$0xff]
    %v262 = vld [vmem:[#allocation2 + $0x60] sm:$0xff]
    %v263 = vld [vmem:[#allocation2 + $0x68] sm:$0xff]
    %v264 = vld [vmem:[#allocation2 + $0x70] sm:$0xff]
    %v265 = vld [vmem:[#allocation2 + $0x78] sm:$0xff]
    %v266 = vld [vmem:[#allocation2 + $0x80] sm:$0xff]
    %v267 = vld [vmem:[#allocation2 + $0x88] sm:$0xff]
    %v268 = vld [vmem:[#allocation2 + $0x90] sm:$0xff]
    %v269 = vld [vmem:[#allocation2 + $0x98] sm:$0xff]
    %v270 = vld [vmem:[#allocation2 + $0xa0] sm:$0xff]
    %v271 = vld [vmem:[#allocation2 + $0xa8] sm:$0xff]
    %v272 = vld [vmem:[#allocation2 + $0xb0] sm:$0xff]
    %v273 = vld [vmem:[#allocation2 + $0xb8] sm:$0xff]
    %v274 = vld [vmem:[#allocation2 + $0xc0] sm:$0xff]
    %v275 = vld [vmem:[#allocation2 + $0xc8] sm:$0xff]
    %v276 = vld [vmem:[#allocation2 + $0xd0] sm:$0xff]
    %v277 = vld [vmem:[#allocation2 + $0xd8] sm:$0xff]
    %v278 = vld [vmem:[#allocation2 + $0xe0] sm:$0xff]
    %v279 = vld [vmem:[#allocation2 + $0xe8] sm:$0xff]
    %v280 = vld [vmem:[#allocation2 + $0xf0] sm:$0xff]
    %v281 = vld [vmem:[#allocation2 + $0xf8] sm:$0xff]
    %v282 = vld [vmem:[#allocation2 + $0x100] sm:$0xff]
    %v283 = vld [vmem:[#allocation2 + $0x108] sm:$0xff]
    %v284 = vld [vmem:[#allocation2 + $0x110] sm:$0xff]
    %v285 = vld [vmem:[#allocation2 + $0x118] sm:$0xff]
    %v286 = vld [vmem:[#allocation2 + $0x120] sm:$0xff]
    %v287 = vld [vmem:[#allocation2 + $0x128] sm:$0xff]
    %v288 = vld [vmem:[#allocation2 + $0x130] sm:$0xff]
    %v289 = vld [vmem:[#allocation2 + $0x138] sm:$0xff]
    %v290 = vld [vmem:[#allocation2 + $0x140] sm:$0xff]
    %v291 = vld [vmem:[#allocation2 + $0x148] sm:$0xff]
    %v292 = vld [vmem:[#allocation2 + $0x150] sm:$0xff]
    %v293 = vld [vmem:[#allocation2 + $0x158] sm:$0xff]
    %v294 = vld [vmem:[#allocation2 + $0x160] sm:$0xff]
    %v295 = vld [vmem:[#allocation2 + $0x168] sm:$0xff]
    %v296 = vld [vmem:[#allocation2 + $0x170] sm:$0xff]
    %v297 = vld [vmem:[#allocation2 + $0x178] sm:$0xff]
    %v298 = vld [vmem:[#allocation2 + $0x180] sm:$0xff]
    %v299 = vld [vmem:[#allocation2 + $0x188] sm:$0xff]
    %v300 = vld [vmem:[#allocation2 + $0x190] sm:$0xff]
    %v301 = vld [vmem:[#allocation2 + $0x198] sm:$0xff]
    %v302 = vld [vmem:[#allocation2 + $0x1a0] sm:$0xff]
    %v303 = vld [vmem:[#allocation2 + $0x1a8] sm:$0xff]
    %v304 = vld [vmem:[#allocation2 + $0x1b0] sm:$0xff]
    %v305 = vld [vmem:[#allocation2 + $0x1b8] sm:$0xff]
    %v306 = vld [vmem:[#allocation2 + $0x1c0] sm:$0xff]
    %v307 = vld [vmem:[#allocation2 + $0x1c8] sm:$0xff]
    %v308 = vld [vmem:[#allocation2 + $0x1d0] sm:$0xff]
    %v309 = vld [vmem:[#allocation2 + $0x1d8] sm:$0xff]
    %v310 = vld [vmem:[#allocation2 + $0x1e0] sm:$0xff]
    %v311 = vld [vmem:[#allocation2 + $0x1e8] sm:$0xff]
    %v312 = vld [vmem:[#allocation2 + $0x1f0] sm:$0xff]
    %v313 = vld [vmem:[#allocation2 + $0x1f8] sm:$0xff]
    %v314 = vld [vmem:[#allocation2 + $0x200] sm:$0xff]
    %v315 = vld [vmem:[#allocation2 + $0x208] sm:$0xff]
    %v316 = vld [vmem:[#allocation2 + $0x210] sm:$0xff]
    %v317 = vld [vmem:[#allocation2 + $0x218] sm:$0xff]
    %v318 = vld [vmem:[#allocation2 + $0x220] sm:$0xff]
    %v319 = vld [vmem:[#allocation2 + $0x228] sm:$0xff]
    %v320 = vld [vmem:[#allocation2 + $0x230] sm:$0xff]
    %v321 = vld [vmem:[#allocation2 + $0x238] sm:$0xff]
    %v322 = vld [vmem:[#allocation2 + $0x240] sm:$0xff]
    %v323 = vld [vmem:[#allocation2 + $0x248] sm:$0xff]
    %v324 = vld [vmem:[#allocation2 + $0x250] sm:$0xff]
    %v325 = vld [vmem:[#allocation2 + $0x258] sm:$0xff]
    %v326 = vld [vmem:[#allocation2 + $0x260] sm:$0xff]
    %v327 = vld [vmem:[#allocation2 + $0x268] sm:$0xff]
    %v328 = vld [vmem:[#allocation2 + $0x270] sm:$0xff]
    %v329 = vld [vmem:[#allocation2 + $0x278] sm:$0xff]
    %v330 = vld [vmem:[#allocation2 + $0x280] sm:$0xff]
    %v331 = vld [vmem:[#allocation2 + $0x288] sm:$0xff]
    %v332 = vld [vmem:[#allocation2 + $0x290] sm:$0xff]
    %v333 = vld [vmem:[#allocation2 + $0x298] sm:$0xff]
    %v334 = vld [vmem:[#allocation2 + $0x2a0] sm:$0xff]
    %v335 = vld [vmem:[#allocation2 + $0x2a8] sm:$0xff]
    %v336 = vld [vmem:[#allocation2 + $0x2b0] sm:$0xff]
    %v337 = vld [vmem:[#allocation2 + $0x2b8] sm:$0xff]
    %v338 = vld [vmem:[#allocation2 + $0x2c0] sm:$0xff]
    %v339 = vld [vmem:[#allocation2 + $0x2c8] sm:$0xff]
    %v340 = vld [vmem:[#allocation2 + $0x2d0] sm:$0xff]
    %v341 = vld [vmem:[#allocation2 + $0x2d8] sm:$0xff]
    %v342 = vld [vmem:[#allocation2 + $0x2e0] sm:$0xff]
    %v343 = vld [vmem:[#allocation2 + $0x2e8] sm:$0xff]
    %v344 = vld [vmem:[#allocation2 + $0x2f0] sm:$0xff]
    %v345 = vld [vmem:[#allocation2 + $0x2f8] sm:$0xff]
    %v346 = vld [vmem:[#allocation2 + $0x300] sm:$0xff]
    %v347 = vld [vmem:[#allocation2 + $0x308] sm:$0xff]
    %v348 = vld [vmem:[%s2] sm:$0x3]
    %v350 = vlaneseq
    %v351 = vshrl.u32 %v350, 7
    %v352 = vsub.s32 0, %v351
    %v353 = vrot.slane %v348, %v352
    %v354 = vlaneseq
    %v355 = vshrl.u32 %v354, 7
    %v356 = vsub.s32 1, %v355
    %v357 = vrot.slane %v348, %v356
    %v458 = vunpack.c.l.b16 %v250
    %v459 = vunpack.c.h.b16 %v250
    %v460 = vunpack.c.l.b16 %v251
    %v461 = vunpack.c.h.b16 %v251
    %v462 = vunpack.c.l.b16 %v252
    %v463 = vunpack.c.h.b16 %v252
    %v464 = vunpack.c.l.b16 %v253
    %v465 = vunpack.c.h.b16 %v253
    %v466 = vunpack.c.l.b16 %v254
    %v467 = vunpack.c.h.b16 %v254
    %v468 = vunpack.c.l.b16 %v255
    %v469 = vunpack.c.h.b16 %v255
    %v470 = vunpack.c.l.b16 %v256
    %v471 = vunpack.c.h.b16 %v256
    %v472 = vunpack.c.l.b16 %v257
    %v473 = vunpack.c.h.b16 %v257
    %v474 = vunpack.c.l.b16 %v258
    %v475 = vunpack.c.h.b16 %v258
    %v476 = vunpack.c.l.b16 %v259
    %v477 = vunpack.c.h.b16 %v259
    %v478 = vunpack.c.l.b16 %v260
    %v479 = vunpack.c.h.b16 %v260
    %v480 = vunpack.c.l.b16 %v261
    %v481 = vunpack.c.h.b16 %v261
    %v482 = vunpack.c.l.b16 %v262
    %v483 = vunpack.c.h.b16 %v262
    %v484 = vunpack.c.l.b16 %v263
    %v485 = vunpack.c.h.b16 %v263
    %v486 = vunpack.c.l.b16 %v264
    %v487 = vunpack.c.h.b16 %v264
    %v488 = vunpack.c.l.b16 %v265
    %v489 = vunpack.c.h.b16 %v265
    %v490 = vunpack.c.l.b16 %v266
    %v491 = vunpack.c.h.b16 %v266
    %v492 = vunpack.c.l.b16 %v267
    %v493 = vunpack.c.h.b16 %v267
    %v494 = vunpack.c.l.b16 %v268
    %v495 = vunpack.c.h.b16 %v268
    %v496 = vunpack.c.l.b16 %v269
    %v497 = vunpack.c.h.b16 %v269
    %v498 = vunpack.c.l.b16 %v270
    %v499 = vunpack.c.h.b16 %v270
    %v500 = vunpack.c.l.b16 %v271
    %v501 = vunpack.c.h.b16 %v271
    %v502 = vunpack.c.l.b16 %v272
    %v503 = vunpack.c.h.b16 %v272
    %v504 = vunpack.c.l.b16 %v273
    %v505 = vunpack.c.h.b16 %v273
    %v506 = vunpack.c.l.b16 %v274
    %v507 = vunpack.c.h.b16 %v274
    %v508 = vunpack.c.l.b16 %v275
    %v509 = vunpack.c.h.b16 %v275
    %v510 = vunpack.c.l.b16 %v276
    %v511 = vunpack.c.h.b16 %v276
    %v512 = vunpack.c.l.b16 %v277
    %v513 = vunpack.c.h.b16 %v277
    %v514 = vunpack.c.l.b16 %v278
    %v515 = vunpack.c.h.b16 %v278
    %v516 = vunpack.c.l.b16 %v279
    %v517 = vunpack.c.h.b16 %v279
    %v518 = vunpack.c.l.b16 %v280
    %v519 = vunpack.c.h.b16 %v280
    %v520 = vunpack.c.l.b16 %v281
    %v521 = vunpack.c.h.b16 %v281
    %v522 = vunpack.c.l.b16 %v282
    %v523 = vunpack.c.h.b16 %v282
    %v524 = vunpack.c.l.b16 %v283
    %v525 = vunpack.c.h.b16 %v283
    %v526 = vunpack.c.l.b16 %v284
    %v527 = vunpack.c.h.b16 %v284
    %v528 = vunpack.c.l.b16 %v285
    %v529 = vunpack.c.h.b16 %v285
    %v530 = vunpack.c.l.b16 %v286
    %v531 = vunpack.c.h.b16 %v286
    %v532 = vunpack.c.l.b16 %v287
    %v533 = vunpack.c.h.b16 %v287
    %v534 = vunpack.c.l.b16 %v288
    %v535 = vunpack.c.h.b16 %v288
    %v536 = vunpack.c.l.b16 %v289
    %v537 = vunpack.c.h.b16 %v289
    %v538 = vunpack.c.l.b16 %v290
    %v539 = vunpack.c.h.b16 %v290
    %v540 = vunpack.c.l.b16 %v291
    %v541 = vunpack.c.h.b16 %v291
    %v542 = vunpack.c.l.b16 %v292
    %v543 = vunpack.c.h.b16 %v292
    %v544 = vunpack.c.l.b16 %v293
    %v545 = vunpack.c.h.b16 %v293
    %v546 = vunpack.c.l.b16 %v294
    %v547 = vunpack.c.h.b16 %v294
    %v548 = vunpack.c.l.b16 %v295
    %v549 = vunpack.c.h.b16 %v295
    %v550 = vunpack.c.l.b16 %v296
    %v551 = vunpack.c.h.b16 %v296
    %v552 = vunpack.c.l.b16 %v297
    %v553 = vunpack.c.h.b16 %v297
    %v554 = vunpack.c.l.b16 %v298
    %v555 = vunpack.c.h.b16 %v298
    %v556 = vunpack.c.l.b16 %v299
    %v557 = vunpack.c.h.b16 %v299
    %v558 = vunpack.c.l.b16 %v300
    %v559 = vunpack.c.h.b16 %v300
    %v560 = vunpack.c.l.b16 %v301
    %v561 = vunpack.c.h.b16 %v301
    %v562 = vunpack.c.l.b16 %v302
    %v563 = vunpack.c.h.b16 %v302
    %v564 = vunpack.c.l.b16 %v303
    %v565 = vunpack.c.h.b16 %v303
    %v566 = vunpack.c.l.b16 %v304
    %v567 = vunpack.c.h.b16 %v304
    %v568 = vunpack.c.l.b16 %v305
    %v569 = vunpack.c.h.b16 %v305
    %v570 = vunpack.c.l.b16 %v306
    %v571 = vunpack.c.h.b16 %v306
    %v572 = vunpack.c.l.b16 %v307
    %v573 = vunpack.c.h.b16 %v307
    %v574 = vunpack.c.l.b16 %v308
    %v575 = vunpack.c.h.b16 %v308
    %v576 = vunpack.c.l.b16 %v309
    %v577 = vunpack.c.h.b16 %v309
    %v578 = vunpack.c.l.b16 %v310
    %v579 = vunpack.c.h.b16 %v310
    %v580 = vunpack.c.l.b16 %v311
    %v581 = vunpack.c.h.b16 %v311
    %v582 = vunpack.c.l.b16 %v312
    %v583 = vunpack.c.h.b16 %v312
    %v584 = vunpack.c.l.b16 %v313
    %v585 = vunpack.c.h.b16 %v313
    %v586 = vunpack.c.l.b16 %v314
    %v587 = vunpack.c.h.b16 %v314
    %v588 = vunpack.c.l.b16 %v315
    %v589 = vunpack.c.h.b16 %v315
    %v590 = vunpack.c.l.b16 %v316
    %v591 = vunpack.c.h.b16 %v316
    %v592 = vunpack.c.l.b16 %v317
    %v593 = vunpack.c.h.b16 %v317
    %v594 = vunpack.c.l.b16 %v318
    %v595 = vunpack.c.h.b16 %v318
    %v596 = vunpack.c.l.b16 %v319
    %v597 = vunpack.c.h.b16 %v319
    %v598 = vunpack.c.l.b16 %v320
    %v599 = vunpack.c.h.b16 %v320
    %v600 = vunpack.c.l.b16 %v321
    %v601 = vunpack.c.h.b16 %v321
    %v602 = vunpack.c.l.b16 %v322
    %v603 = vunpack.c.h.b16 %v322
    %v604 = vunpack.c.l.b16 %v323
    %v605 = vunpack.c.h.b16 %v323
    %v606 = vunpack.c.l.b16 %v324
    %v607 = vunpack.c.h.b16 %v324
    %v608 = vunpack.c.l.b16 %v325
    %v609 = vunpack.c.h.b16 %v325
    %v610 = vunpack.c.l.b16 %v326
    %v611 = vunpack.c.h.b16 %v326
    %v612 = vunpack.c.l.b16 %v327
    %v613 = vunpack.c.h.b16 %v327
    %v614 = vunpack.c.l.b16 %v328
    %v615 = vunpack.c.h.b16 %v328
    %v616 = vunpack.c.l.b16 %v329
    %v617 = vunpack.c.h.b16 %v329
    %v618 = vunpack.c.l.b16 %v330
    %v619 = vunpack.c.h.b16 %v330
    %v620 = vunpack.c.l.b16 %v331
    %v621 = vunpack.c.h.b16 %v331
    %v622 = vunpack.c.l.b16 %v332
    %v623 = vunpack.c.h.b16 %v332
    %v624 = vunpack.c.l.b16 %v333
    %v625 = vunpack.c.h.b16 %v333
    %v626 = vunpack.c.l.b16 %v334
    %v627 = vunpack.c.h.b16 %v334
    %v628 = vunpack.c.l.b16 %v335
    %v629 = vunpack.c.h.b16 %v335
    %v630 = vunpack.c.l.b16 %v336
    %v631 = vunpack.c.h.b16 %v336
    %v632 = vunpack.c.l.b16 %v337
    %v633 = vunpack.c.h.b16 %v337
    %v634 = vunpack.c.l.b16 %v338
    %v635 = vunpack.c.h.b16 %v338
    %v636 = vunpack.c.l.b16 %v339
    %v637 = vunpack.c.h.b16 %v339
    %v638 = vunpack.c.l.b16 %v340
    %v639 = vunpack.c.h.b16 %v340
    %v640 = vunpack.c.l.b16 %v341
    %v641 = vunpack.c.h.b16 %v341
    %v642 = vunpack.c.l.b16 %v342
    %v643 = vunpack.c.h.b16 %v342
    %v644 = vunpack.c.l.b16 %v343
    %v645 = vunpack.c.h.b16 %v343
    %v646 = vunpack.c.l.b16 %v344
    %v647 = vunpack.c.h.b16 %v344
    %v648 = vunpack.c.l.b16 %v345
    %v649 = vunpack.c.h.b16 %v345
    %v650 = vunpack.c.l.b16 %v346
    %v651 = vunpack.c.h.b16 %v346
    %v652 = vunpack.c.l.b16 %v347
    %v653 = vunpack.c.h.b16 %v347
    %v654 = vpack.c.b16 %v460, %v458
    %v655 = vpack.c.b16 %v461, %v459
    %v656 = vpack.c.b16 %v464, %v462
    %v657 = vpack.c.b16 %v465, %v463
    %v658 = vpack.c.b16 %v468, %v466
    %v659 = vpack.c.b16 %v469, %v467
    %v660 = vpack.c.b16 %v472, %v470
    %v661 = vpack.c.b16 %v473, %v471
    %v662 = vpack.c.b16 %v476, %v474
    %v663 = vpack.c.b16 %v477, %v475
    %v664 = vpack.c.b16 %v480, %v478
    %v665 = vpack.c.b16 %v481, %v479
    %v666 = vpack.c.b16 %v484, %v482
    %v667 = vpack.c.b16 %v485, %v483
    %v668 = vpack.c.b16 %v488, %v486
    %v669 = vpack.c.b16 %v489, %v487
    %v670 = vpack.c.b16 %v492, %v490
    %v671 = vpack.c.b16 %v493, %v491
    %v672 = vpack.c.b16 %v496, %v494
    %v673 = vpack.c.b16 %v497, %v495
    %v674 = vpack.c.b16 %v500, %v498
    %v675 = vpack.c.b16 %v501, %v499
    %v676 = vpack.c.b16 %v504, %v502
    %v677 = vpack.c.b16 %v505, %v503
    %v678 = vpack.c.b16 %v508, %v506
    %v679 = vpack.c.b16 %v509, %v507
    %v680 = vpack.c.b16 %v512, %v510
    %v681 = vpack.c.b16 %v513, %v511
    %v682 = vpack.c.b16 %v516, %v514
    %v683 = vpack.c.b16 %v517, %v515
    %v684 = vpack.c.b16 %v520, %v518
    %v685 = vpack.c.b16 %v521, %v519
    %v686 = vpack.c.b16 %v524, %v522
    %v687 = vpack.c.b16 %v525, %v523
    %v688 = vpack.c.b16 %v528, %v526
    %v689 = vpack.c.b16 %v529, %v527
    %v690 = vpack.c.b16 %v532, %v530
    %v691 = vpack.c.b16 %v533, %v531
    %v692 = vpack.c.b16 %v536, %v534
    %v693 = vpack.c.b16 %v537, %v535
    %v694 = vpack.c.b16 %v540, %v538
    %v695 = vpack.c.b16 %v541, %v539
    %v696 = vpack.c.b16 %v544, %v542
    %v697 = vpack.c.b16 %v545, %v543
    %v698 = vpack.c.b16 %v548, %v546
    %v699 = vpack.c.b16 %v549, %v547
    %v700 = vpack.c.b16 %v552, %v550
    %v701 = vpack.c.b16 %v553, %v551
    %v702 = vpack.c.b16 %v556, %v554
    %v703 = vpack.c.b16 %v557, %v555
    %v704 = vpack.c.b16 %v560, %v558
    %v705 = vpack.c.b16 %v561, %v559
    %v706 = vpack.c.b16 %v564, %v562
    %v707 = vpack.c.b16 %v565, %v563
    %v708 = vpack.c.b16 %v568, %v566
    %v709 = vpack.c.b16 %v569, %v567
    %v710 = vpack.c.b16 %v572, %v570
    %v711 = vpack.c.b16 %v573, %v571
    %v712 = vpack.c.b16 %v576, %v574
    %v713 = vpack.c.b16 %v577, %v575
    %v714 = vpack.c.b16 %v580, %v578
    %v715 = vpack.c.b16 %v581, %v579
    %v716 = vpack.c.b16 %v584, %v582
    %v717 = vpack.c.b16 %v585, %v583
    %v718 = vpack.c.b16 %v588, %v586
    %v719 = vpack.c.b16 %v589, %v587
    %v720 = vpack.c.b16 %v592, %v590
    %v721 = vpack.c.b16 %v593, %v591
    %v722 = vpack.c.b16 %v596, %v594
    %v723 = vpack.c.b16 %v597, %v595
    %v724 = vpack.c.b16 %v600, %v598
    %v725 = vpack.c.b16 %v601, %v599
    %v726 = vpack.c.b16 %v604, %v602
    %v727 = vpack.c.b16 %v605, %v603
    %v728 = vpack.c.b16 %v608, %v606
    %v729 = vpack.c.b16 %v609, %v607
    %v730 = vpack.c.b16 %v612, %v610
    %v731 = vpack.c.b16 %v613, %v611
    %v732 = vpack.c.b16 %v616, %v614
    %v733 = vpack.c.b16 %v617, %v615
    %v734 = vpack.c.b16 %v620, %v618
    %v735 = vpack.c.b16 %v621, %v619
    %v736 = vpack.c.b16 %v624, %v622
    %v737 = vpack.c.b16 %v625, %v623
    %v738 = vpack.c.b16 %v628, %v626
    %v739 = vpack.c.b16 %v629, %v627
    %v740 = vpack.c.b16 %v632, %v630
    %v741 = vpack.c.b16 %v633, %v631
    %v742 = vpack.c.b16 %v636, %v634
    %v743 = vpack.c.b16 %v637, %v635
    %v744 = vpack.c.b16 %v640, %v638
    %v745 = vpack.c.b16 %v641, %v639
    %v746 = vpack.c.b16 %v644, %v642
    %v747 = vpack.c.b16 %v645, %v643
    %v748 = vpack.c.b16 %v648, %v646
    %v749 = vpack.c.b16 %v649, %v647
    %v750 = vpack.c.b16 %v652, %v650
    %v751 = vpack.c.b16 %v653, %v651
    %vm850 = vcmask 130048
    %v852 = vsel %vm850, %v249, 0
    %854 = vmatprep.subr.bf16.mxu0 %v655
    %855 = vmatpush1.bf16.msra.mxu0 %v654
    %856 = vmatprep.subr.bf16.mxu0 %v657
    %857 = vmatpush1.bf16.msra.mxu0 %v656
    %858 = vmatprep.subr.bf16.mxu0 %v659
    %859 = vmatpush1.bf16.msra.mxu0 %v658
    %860 = vmatprep.subr.bf16.mxu0 %v661
    %861 = vmatpush1.bf16.msra.mxu0 %v660
    %862 = vmatprep.subr.bf16.mxu0 %v663
    %863 = vmatpush1.bf16.msra.mxu0 %v662
    %864 = vmatprep.subr.bf16.mxu0 %v665
    %865 = vmatpush1.bf16.msra.mxu0 %v664
    %866 = vmatprep.subr.bf16.mxu0 %v667
    %867 = vmatpush1.bf16.msra.mxu0 %v666
    %868 = vmatprep.subr.bf16.mxu0 %v669
    %869 = vmatpush1.bf16.msra.mxu0 %v668
    %870 = vmatprep.subr.bf16.mxu0 %v671
    %871 = vmatpush1.bf16.msra.mxu0 %v670
    %872 = vmatprep.subr.bf16.mxu0 %v673
    %873 = vmatpush1.bf16.msra.mxu0 %v672
    %874 = vmatprep.subr.bf16.mxu0 %v675
    %875 = vmatpush1.bf16.msra.mxu0 %v674
    %876 = vmatprep.subr.bf16.mxu0 %v677
    %877 = vmatpush1.bf16.msra.mxu0 %v676
    %878 = vmatprep.subr.bf16.mxu0 %v679
    %879 = vmatpush1.bf16.msra.mxu0 %v678
    %880 = vmatprep.subr.bf16.mxu0 %v681
    %881 = vmatpush1.bf16.msra.mxu0 %v680
    %882 = vmatprep.subr.bf16.mxu0 %v683
    %883 = vmatpush1.bf16.msra.mxu0 %v682
    %884 = vmatprep.subr.bf16.mxu0 %v685
    %885 = vmatpush1.bf16.msra.mxu0 %v684
    %886 = vmatprep.mubr.bf16.mxu0 %v244
    %887 = vmatmul.mubr.bf16.gmra.mrb[0].mxu0 %v243
    %v888 = vpop.f32.mrb[0].mxu0
    %v889 = vadd.f32 %v353, %v888
    %v890 = vpop.f32.mrb[0].mxu0
    %v891 = vadd.f32 %v357, %v890
    %v892 = vpop.f32.mrb[0].mxu0
    %v893 = vadd.f32 %v353, %v892
    %v894 = vpop.f32.mrb[0].mxu0
    %v895 = vadd.f32 %v357, %v894
    %896 = vdwg.mxu0
    %897 = vmatprep.subr.bf16.mxu0 %v687
    %898 = vmatpush1.bf16.msra.mxu0 %v686
    %899 = vmatprep.subr.bf16.mxu0 %v689
    %900 = vmatpush1.bf16.msra.mxu0 %v688
    %901 = vmatprep.subr.bf16.mxu0 %v691
    %902 = vmatpush1.bf16.msra.mxu0 %v690
    %903 = vmatprep.subr.bf16.mxu0 %v693
    %904 = vmatpush1.bf16.msra.mxu0 %v692
    %905 = vmatprep.subr.bf16.mxu0 %v695
    %906 = vmatpush1.bf16.msra.mxu0 %v694
    %907 = vmatprep.subr.bf16.mxu0 %v697
    %908 = vmatpush1.bf16.msra.mxu0 %v696
    %909 = vmatprep.subr.bf16.mxu0 %v699
    %910 = vmatpush1.bf16.msra.mxu0 %v698
    %911 = vmatprep.subr.bf16.mxu0 %v701
    %912 = vmatpush1.bf16.msra.mxu0 %v700
    %913 = vmatprep.subr.bf16.mxu0 %v703
    %914 = vmatpush1.bf16.msra.mxu0 %v702
    %915 = vmatprep.subr.bf16.mxu0 %v705
    %916 = vmatpush1.bf16.msra.mxu0 %v704
    %917 = vmatprep.subr.bf16.mxu0 %v707
    %918 = vmatpush1.bf16.msra.mxu0 %v706
    %919 = vmatprep.subr.bf16.mxu0 %v709
    %920 = vmatpush1.bf16.msra.mxu0 %v708
    %921 = vmatprep.subr.bf16.mxu0 %v711
    %922 = vmatpush1.bf16.msra.mxu0 %v710
    %923 = vmatprep.subr.bf16.mxu0 %v713
    %924 = vmatpush1.bf16.msra.mxu0 %v712
    %925 = vmatprep.subr.bf16.mxu0 %v715
    %926 = vmatpush1.bf16.msra.mxu0 %v714
    %927 = vmatprep.subr.bf16.mxu0 %v717
    %928 = vmatpush1.bf16.msra.mxu0 %v716
    %929 = vmatprep.mubr.bf16.mxu0 %v246
    %930 = vmatmul.mubr.bf16.gmra.mrb[0].mxu0 %v245
    %v931 = vpop.f32.mrb[0].mxu0
    %v932 = vadd.f32 %v889, %v931
    %v933 = vpop.f32.mrb[0].mxu0
    %v934 = vadd.f32 %v891, %v933
    %v935 = vpop.f32.mrb[0].mxu0
    %v936 = vadd.f32 %v893, %v935
    %v937 = vpop.f32.mrb[0].mxu0
    %v938 = vadd.f32 %v895, %v937
    %939 = vdwg.mxu0
    %940 = vmatprep.subr.bf16.mxu0 %v719
    %941 = vmatpush1.bf16.msra.mxu0 %v718
    %942 = vmatprep.subr.bf16.mxu0 %v721
    %943 = vmatpush1.bf16.msra.mxu0 %v720
    %944 = vmatprep.subr.bf16.mxu0 %v723
    %945 = vmatpush1.bf16.msra.mxu0 %v722
    %946 = vmatprep.subr.bf16.mxu0 %v725
    %947 = vmatpush1.bf16.msra.mxu0 %v724
    %948 = vmatprep.subr.bf16.mxu0 %v727
    %949 = vmatpush1.bf16.msra.mxu0 %v726
    %950 = vmatprep.subr.bf16.mxu0 %v729
    %951 = vmatpush1.bf16.msra.mxu0 %v728
    %952 = vmatprep.subr.bf16.mxu0 %v731
    %953 = vmatpush1.bf16.msra.mxu0 %v730
    %954 = vmatprep.subr.bf16.mxu0 %v733
    %955 = vmatpush1.bf16.msra.mxu0 %v732
    %956 = vmatprep.subr.bf16.mxu0 %v735
    %957 = vmatpush1.bf16.msra.mxu0 %v734
    %958 = vmatprep.subr.bf16.mxu0 %v737
    %959 = vmatpush1.bf16.msra.mxu0 %v736
    %960 = vmatprep.subr.bf16.mxu0 %v739
    %961 = vmatpush1.bf16.msra.mxu0 %v738
    %962 = vmatprep.subr.bf16.mxu0 %v741
    %963 = vmatpush1.bf16.msra.mxu0 %v740
    %964 = vmatprep.subr.bf16.mxu0 %v743
    %965 = vmatpush1.bf16.msra.mxu0 %v742
    %966 = vmatprep.subr.bf16.mxu0 %v745
    %967 = vmatpush1.bf16.msra.mxu0 %v744
    %968 = vmatprep.subr.bf16.mxu0 %v747
    %969 = vmatpush1.bf16.msra.mxu0 %v746
    %970 = vmatprep.subr.bf16.mxu0 %v749
    %971 = vmatpush1.bf16.msra.mxu0 %v748
    %972 = vmatprep.mubr.bf16.mxu0 %v248
    %973 = vmatmul.mubr.bf16.gmra.mrb[0].mxu0 %v247
    %v974 = vpop.f32.mrb[0].mxu0
    %v975 = vadd.f32 %v932, %v974
    %v976 = vpop.f32.mrb[0].mxu0
    %v977 = vadd.f32 %v934, %v976
    %v978 = vpop.f32.mrb[0].mxu0
    %v979 = vadd.f32 %v936, %v978
    %v980 = vpop.f32.mrb[0].mxu0
    %v981 = vadd.f32 %v938, %v980
    %982 = vdwg.mxu0
    %983 = vmatprep.subr.bf16.mxu0 %v751
    %984 = vmatpush1.bf16.msra.mxu0 %v750
    %985 = vmatprep.subr.bf16.mxu0 0
    %986 = vmatpush1.bf16.msra.mxu0 0
    %987 = vmatprep.subr.bf16.mxu0 0
    %988 = vmatpush1.bf16.msra.mxu0 0
    %989 = vmatprep.subr.bf16.mxu0 0
    %990 = vmatpush1.bf16.msra.mxu0 0
    %991 = vmatprep.subr.bf16.mxu0 0
    %992 = vmatpush1.bf16.msra.mxu0 0
    %993 = vmatprep.subr.bf16.mxu0 0
    %994 = vmatpush1.bf16.msra.mxu0 0
    %995 = vmatprep.subr.bf16.mxu0 0
    %996 = vmatpush1.bf16.msra.mxu0 0
    %997 = vmatprep.subr.bf16.mxu0 0
    %998 = vmatpush1.bf16.msra.mxu0 0
    %999 = vmatprep.subr.bf16.mxu0 0
    %1000 = vmatpush1.bf16.msra.mxu0 0
    %1001 = vmatprep.subr.bf16.mxu0 0
    %1002 = vmatpush1.bf16.msra.mxu0 0
    %1003 = vmatprep.subr.bf16.mxu0 0
    %1004 = vmatpush1.bf16.msra.mxu0 0
    %1005 = vmatprep.subr.bf16.mxu0 0
    %1006 = vmatpush1.bf16.msra.mxu0 0
    %1007 = vmatprep.subr.bf16.mxu0 0
    %1008 = vmatpush1.bf16.msra.mxu0 0
    %1009 = vmatprep.subr.bf16.mxu0 0
    %1010 = vmatpush1.bf16.msra.mxu0 0
    %1011 = vmatprep.subr.bf16.mxu0 0
    %1012 = vmatpush1.bf16.msra.mxu0 0
    %1013 = vmatprep.subr.bf16.mxu0 0
    %1014 = vmatpush1.bf16.msra.mxu0 0
    %1015 = vmatprep.mubr.bf16.mxu0 0
    %1016 = vmatmul.mubr.bf16.gmra.mrb[0].mxu0 %v852
    %v1017 = vpop.f32.mrb[0].mxu0
    %v1018 = vadd.f32 %v975, %v1017
    %v1019 = vpop.f32.mrb[0].mxu0
    %v1020 = vadd.f32 %v977, %v1019
    %v1021 = vpop.f32.mrb[0].mxu0
    %v1022 = vadd.f32 %v979, %v1021
    %v1023 = vpop.f32.mrb[0].mxu0
    %v1024 = vadd.f32 %v981, %v1023
    %1025 = vdwg.mxu0
    %v1026 = vmax.f32 %v1018, 0.0
    %v1027 = vmax.f32 %v1020, 0.0
    %v1028 = vmax.f32 %v1022, 0.0
    %v1029 = vmax.f32 %v1024, 0.0
    %v1030 = vpack.c.bf16 %v1028, %v1026
    %v1031 = vpack.c.bf16 %v1029, %v1027
    %v1032 = vld [vmem:[#allocation4] sm:$0xff]
    %v1033 = vld [vmem:[#allocation4 + $0x8] sm:$0xff]
    %v1034 = vld [vmem:[#allocation4 + $0x10] sm:$0xff]
    %v1035 = vld [vmem:[#allocation4 + $0x18] sm:$0xff]
    %v1036 = vld [vmem:[#allocation4 + $0x20] sm:$0xff]
    %v1037 = vld [vmem:[#allocation4 + $0x28] sm:$0xff]
    %v1038 = vld [vmem:[#allocation4 + $0x30] sm:$0xff]
    %v1039 = vld [vmem:[#allocation4 + $0x38] sm:$0xff]
    %v1040 = vld [vmem:[#allocation4 + $0x40] sm:$0xff]
    %v1041 = vld [vmem:[#allocation4 + $0x48] sm:$0xff]
    %v1042 = vld [vmem:[#allocation4 + $0x50] sm:$0xff]
    %v1043 = vld [vmem:[#allocation4 + $0x58] sm:$0xff]
    %v1044 = vld [vmem:[#allocation4 + $0x60] sm:$0xff]
    %v1045 = vld [vmem:[#allocation4 + $0x68] sm:$0xff]
    %v1046 = vld [vmem:[#allocation4 + $0x70] sm:$0xff]
    %v1047 = vld [vmem:[#allocation4 + $0x78] sm:$0xff]
    %v1048 = vld [vmem:[#allocation4 + $0x80] sm:$0xff]
    %v1049 = vld [vmem:[#allocation4 + $0x88] sm:$0xff]
    %v1050 = vld [vmem:[#allocation4 + $0x90] sm:$0xff]
    %v1051 = vld [vmem:[#allocation4 + $0x98] sm:$0xff]
    %v1052 = vld [vmem:[#allocation4 + $0xa0] sm:$0xff]
    %v1053 = vld [vmem:[#allocation4 + $0xa8] sm:$0xff]
    %v1054 = vld [vmem:[#allocation4 + $0xb0] sm:$0xff]
    %v1055 = vld [vmem:[#allocation4 + $0xb8] sm:$0xff]
    %v1056 = vld [vmem:[#allocation4 + $0xc0] sm:$0xff]
    %v1057 = vld [vmem:[#allocation4 + $0xc8] sm:$0xff]
    %v1058 = vld [vmem:[#allocation4 + $0xd0] sm:$0xff]
    %v1059 = vld [vmem:[#allocation4 + $0xd8] sm:$0xff]
    %v1060 = vld [vmem:[#allocation4 + $0xe0] sm:$0xff]
    %v1061 = vld [vmem:[#allocation4 + $0xe8] sm:$0xff]
    %v1062 = vld [vmem:[#allocation4 + $0xf0] sm:$0xff]
    %v1063 = vld [vmem:[#allocation4 + $0xf8] sm:$0xff]
    %v1064 = vld [vmem:[%s4] sm:$0x3]
    %v1066 = vlaneseq
    %v1067 = vshrl.u32 %v1066, 7
    %v1068 = vsub.s32 0, %v1067
    %v1069 = vrot.slane %v1064, %v1068
    %v1070 = vlaneseq
    %v1071 = vshrl.u32 %v1070, 7
    %v1072 = vsub.s32 1, %v1071
    %v1073 = vrot.slane %v1064, %v1072
    %v1108 = vunpack.c.l.b16 %v1032
    %v1109 = vunpack.c.h.b16 %v1032
    %v1110 = vunpack.c.l.b16 %v1033
    %v1111 = vunpack.c.h.b16 %v1033
    %v1112 = vunpack.c.l.b16 %v1034
    %v1113 = vunpack.c.h.b16 %v1034
    %v1114 = vunpack.c.l.b16 %v1035
    %v1115 = vunpack.c.h.b16 %v1035
    %v1116 = vunpack.c.l.b16 %v1036
    %v1117 = vunpack.c.h.b16 %v1036
    %v1118 = vunpack.c.l.b16 %v1037
    %v1119 = vunpack.c.h.b16 %v1037
    %v1120 = vunpack.c.l.b16 %v1038
    %v1121 = vunpack.c.h.b16 %v1038
    %v1122 = vunpack.c.l.b16 %v1039
    %v1123 = vunpack.c.h.b16 %v1039
    %v1124 = vunpack.c.l.b16 %v1040
    %v1125 = vunpack.c.h.b16 %v1040
    %v1126 = vunpack.c.l.b16 %v1041
    %v1127 = vunpack.c.h.b16 %v1041
    %v1128 = vunpack.c.l.b16 %v1042
    %v1129 = vunpack.c.h.b16 %v1042
    %v1130 = vunpack.c.l.b16 %v1043
    %v1131 = vunpack.c.h.b16 %v1043
    %v1132 = vunpack.c.l.b16 %v1044
    %v1133 = vunpack.c.h.b16 %v1044
    %v1134 = vunpack.c.l.b16 %v1045
    %v1135 = vunpack.c.h.b16 %v1045
    %v1136 = vunpack.c.l.b16 %v1046
    %v1137 = vunpack.c.h.b16 %v1046
    %v1138 = vunpack.c.l.b16 %v1047
    %v1139 = vunpack.c.h.b16 %v1047
    %v1140 = vunpack.c.l.b16 %v1048
    %v1141 = vunpack.c.h.b16 %v1048
    %v1142 = vunpack.c.l.b16 %v1049
    %v1143 = vunpack.c.h.b16 %v1049
    %v1144 = vunpack.c.l.b16 %v1050
    %v1145 = vunpack.c.h.b16 %v1050
    %v1146 = vunpack.c.l.b16 %v1051
    %v1147 = vunpack.c.h.b16 %v1051
    %v1148 = vunpack.c.l.b16 %v1052
    %v1149 = vunpack.c.h.b16 %v1052
    %v1150 = vunpack.c.l.b16 %v1053
    %v1151 = vunpack.c.h.b16 %v1053
    %v1152 = vunpack.c.l.b16 %v1054
    %v1153 = vunpack.c.h.b16 %v1054
    %v1154 = vunpack.c.l.b16 %v1055
    %v1155 = vunpack.c.h.b16 %v1055
    %v1156 = vunpack.c.l.b16 %v1056
    %v1157 = vunpack.c.h.b16 %v1056
    %v1158 = vunpack.c.l.b16 %v1057
    %v1159 = vunpack.c.h.b16 %v1057
    %v1160 = vunpack.c.l.b16 %v1058
    %v1161 = vunpack.c.h.b16 %v1058
    %v1162 = vunpack.c.l.b16 %v1059
    %v1163 = vunpack.c.h.b16 %v1059
    %v1164 = vunpack.c.l.b16 %v1060
    %v1165 = vunpack.c.h.b16 %v1060
    %v1166 = vunpack.c.l.b16 %v1061
    %v1167 = vunpack.c.h.b16 %v1061
    %v1168 = vunpack.c.l.b16 %v1062
    %v1169 = vunpack.c.h.b16 %v1062
    %v1170 = vunpack.c.l.b16 %v1063
    %v1171 = vunpack.c.h.b16 %v1063
    %v1172 = vpack.c.b16 %v1110, %v1108
    %v1173 = vpack.c.b16 %v1111, %v1109
    %v1174 = vpack.c.b16 %v1114, %v1112
    %v1175 = vpack.c.b16 %v1115, %v1113
    %v1176 = vpack.c.b16 %v1118, %v1116
    %v1177 = vpack.c.b16 %v1119, %v1117
    %v1178 = vpack.c.b16 %v1122, %v1120
    %v1179 = vpack.c.b16 %v1123, %v1121
    %v1180 = vpack.c.b16 %v1126, %v1124
    %v1181 = vpack.c.b16 %v1127, %v1125
    %v1182 = vpack.c.b16 %v1130, %v1128
    %v1183 = vpack.c.b16 %v1131, %v1129
    %v1184 = vpack.c.b16 %v1134, %v1132
    %v1185 = vpack.c.b16 %v1135, %v1133
    %v1186 = vpack.c.b16 %v1138, %v1136
    %v1187 = vpack.c.b16 %v1139, %v1137
    %v1188 = vpack.c.b16 %v1142, %v1140
    %v1189 = vpack.c.b16 %v1143, %v1141
    %v1190 = vpack.c.b16 %v1146, %v1144
    %v1191 = vpack.c.b16 %v1147, %v1145
    %v1192 = vpack.c.b16 %v1150, %v1148
    %v1193 = vpack.c.b16 %v1151, %v1149
    %v1194 = vpack.c.b16 %v1154, %v1152
    %v1195 = vpack.c.b16 %v1155, %v1153
    %v1196 = vpack.c.b16 %v1158, %v1156
    %v1197 = vpack.c.b16 %v1159, %v1157
    %v1198 = vpack.c.b16 %v1162, %v1160
    %v1199 = vpack.c.b16 %v1163, %v1161
    %v1200 = vpack.c.b16 %v1166, %v1164
    %v1201 = vpack.c.b16 %v1167, %v1165
    %v1202 = vpack.c.b16 %v1170, %v1168
    %v1203 = vpack.c.b16 %v1171, %v1169
    %1236 = vmatprep.subr.bf16.mxu0 %v1173
    %1237 = vmatpush1.bf16.msra.mxu0 %v1172
    %1238 = vmatprep.subr.bf16.mxu0 %v1175
    %1239 = vmatpush1.bf16.msra.mxu0 %v1174
    %1240 = vmatprep.subr.bf16.mxu0 %v1177
    %1241 = vmatpush1.bf16.msra.mxu0 %v1176
    %1242 = vmatprep.subr.bf16.mxu0 %v1179
    %1243 = vmatpush1.bf16.msra.mxu0 %v1178
    %1244 = vmatprep.subr.bf16.mxu0 %v1181
    %1245 = vmatpush1.bf16.msra.mxu0 %v1180
    %1246 = vmatprep.subr.bf16.mxu0 %v1183
    %1247 = vmatpush1.bf16.msra.mxu0 %v1182
    %1248 = vmatprep.subr.bf16.mxu0 %v1185
    %1249 = vmatpush1.bf16.msra.mxu0 %v1184
    %1250 = vmatprep.subr.bf16.mxu0 %v1187
    %1251 = vmatpush1.bf16.msra.mxu0 %v1186
    %1252 = vmatprep.subr.bf16.mxu0 %v1189
    %1253 = vmatpush1.bf16.msra.mxu0 %v1188
    %1254 = vmatprep.subr.bf16.mxu0 %v1191
    %1255 = vmatpush1.bf16.msra.mxu0 %v1190
    %1256 = vmatprep.subr.bf16.mxu0 %v1193
    %1257 = vmatpush1.bf16.msra.mxu0 %v1192
    %1258 = vmatprep.subr.bf16.mxu0 %v1195
    %1259 = vmatpush1.bf16.msra.mxu0 %v1194
    %1260 = vmatprep.subr.bf16.mxu0 %v1197
    %1261 = vmatpush1.bf16.msra.mxu0 %v1196
    %1262 = vmatprep.subr.bf16.mxu0 %v1199
    %1263 = vmatpush1.bf16.msra.mxu0 %v1198
    %1264 = vmatprep.subr.bf16.mxu0 %v1201
    %1265 = vmatpush1.bf16.msra.mxu0 %v1200
    %1266 = vmatprep.subr.bf16.mxu0 %v1203
    %1267 = vmatpush1.bf16.msra.mxu0 %v1202
    %1268 = vmatprep.mubr.bf16.mxu0 %v1031
    %1269 = vmatmul.mubr.bf16.gmra.mrb[0].mxu0 %v1030
    %v1270 = vpop.f32.mrb[0].mxu0
    %v1271 = vadd.f32 %v1069, %v1270
    %v1272 = vpop.f32.mrb[0].mxu0
    %v1273 = vadd.f32 %v1073, %v1272
    %v1274 = vpop.f32.mrb[0].mxu0
    %v1275 = vadd.f32 %v1069, %v1274
    %v1276 = vpop.f32.mrb[0].mxu0
    %v1277 = vadd.f32 %v1073, %v1276
    %1278 = vdwg.mxu0
    %v1279 = vmax.f32 %v1271, 0.0
    %v1280 = vmax.f32 %v1273, 0.0
    %v1281 = vmax.f32 %v1275, 0.0
    %v1282 = vmax.f32 %v1277, 0.0
    %v1283 = vpack.c.bf16 %v1281, %v1279
    %v1284 = vpack.c.bf16 %v1282, %v1280
    %v1285 = vld [vmem:[%s5] sm:$0xf]
    %v1286 = vld [vmem:[%s5 + $0x4] sm:$0xf]
    %v1287 = vld [vmem:[%s5 + $0x8] sm:$0xf]
    %v1288 = vld [vmem:[%s5 + $0xc] sm:$0xf]
    %v1289 = vld [vmem:[%s5 + $0x10] sm:$0xf]
    %v1290 = vld [vmem:[%s5 + $0x14] sm:$0xf]
    %v1291 = vld [vmem:[%s5 + $0x18] sm:$0xf]
    %v1292 = vld [vmem:[%s5 + $0x1c] sm:$0xf]
    %v1293 = vld [vmem:[%s5 + $0x20] sm:$0xf]
    %v1294 = vld [vmem:[%s5 + $0x24] sm:$0xf]
    %v1295 = vld [vmem:[%s5 + $0x28] sm:$0xf]
    %v1296 = vld [vmem:[%s5 + $0x2c] sm:$0xf]
    %v1297 = vld [vmem:[%s5 + $0x30] sm:$0xf]
    %v1298 = vld [vmem:[%s5 + $0x34] sm:$0xf]
    %v1299 = vld [vmem:[%s5 + $0x38] sm:$0xf]
    %v1300 = vld [vmem:[%s5 + $0x3c] sm:$0xf]
    %v1301 = vld [vmem:[%s5 + $0x40] sm:$0xf]
    %v1302 = vld [vmem:[%s5 + $0x44] sm:$0xf]
    %v1303 = vld [vmem:[%s5 + $0x48] sm:$0xf]
    %v1304 = vld [vmem:[%s5 + $0x4c] sm:$0xf]
    %v1305 = vld [vmem:[%s5 + $0x50] sm:$0xf]
    %v1306 = vld [vmem:[%s5 + $0x54] sm:$0xf]
    %v1307 = vld [vmem:[%s5 + $0x58] sm:$0xf]
    %v1308 = vld [vmem:[%s5 + $0x5c] sm:$0xf]
    %v1309 = vld [vmem:[%s5 + $0x60] sm:$0xf]
    %v1310 = vld [vmem:[%s5 + $0x64] sm:$0xf]
    %v1311 = vld [vmem:[%s5 + $0x68] sm:$0xf]
    %v1312 = vld [vmem:[%s5 + $0x6c] sm:$0xf]
    %v1313 = vld [vmem:[%s5 + $0x70] sm:$0xf]
    %v1314 = vld [vmem:[%s5 + $0x74] sm:$0xf]
    %v1315 = vld [vmem:[%s5 + $0x78] sm:$0xf]
    %v1316 = vld [vmem:[%s5 + $0x7c] sm:$0xf]
    %v1317 = vld [vmem:[%s6] sm:$0x1]
    %v1319 = vlaneseq
    %v1320 = vshrl.u32 %v1319, 7
    %v1321 = vsub.s32 0, %v1320
    %v1322 = vrot.slane %v1317, %v1321
    %v1356 = vunpack.c.l.b16 %v1285
    %v1357 = vunpack.c.l.b16 %v1286
    %v1358 = vunpack.c.l.b16 %v1287
    %v1359 = vunpack.c.l.b16 %v1288
    %v1360 = vunpack.c.l.b16 %v1289
    %v1361 = vunpack.c.l.b16 %v1290
    %v1362 = vunpack.c.l.b16 %v1291
    %v1363 = vunpack.c.l.b16 %v1292
    %v1364 = vunpack.c.l.b16 %v1293
    %v1365 = vunpack.c.l.b16 %v1294
    %v1366 = vunpack.c.l.b16 %v1295
    %v1367 = vunpack.c.l.b16 %v1296
    %v1368 = vunpack.c.l.b16 %v1297
    %v1369 = vunpack.c.l.b16 %v1298
    %v1370 = vunpack.c.l.b16 %v1299
    %v1371 = vunpack.c.l.b16 %v1300
    %v1372 = vunpack.c.l.b16 %v1301
    %v1373 = vunpack.c.l.b16 %v1302
    %v1374 = vunpack.c.l.b16 %v1303
    %v1375 = vunpack.c.l.b16 %v1304
    %v1376 = vunpack.c.l.b16 %v1305
    %v1377 = vunpack.c.l.b16 %v1306
    %v1378 = vunpack.c.l.b16 %v1307
    %v1379 = vunpack.c.l.b16 %v1308
    %v1380 = vunpack.c.l.b16 %v1309
    %v1381 = vunpack.c.l.b16 %v1310
    %v1382 = vunpack.c.l.b16 %v1311
    %v1383 = vunpack.c.l.b16 %v1312
    %v1384 = vunpack.c.l.b16 %v1313
    %v1385 = vunpack.c.l.b16 %v1314
    %v1386 = vunpack.c.l.b16 %v1315
    %v1387 = vunpack.c.l.b16 %v1316
    %v1388 = vpack.c.b16 %v1357, %v1356
    %v1389 = vpack.c.b16 %v1359, %v1358
    %v1390 = vpack.c.b16 %v1361, %v1360
    %v1391 = vpack.c.b16 %v1363, %v1362
    %v1392 = vpack.c.b16 %v1365, %v1364
    %v1393 = vpack.c.b16 %v1367, %v1366
    %v1394 = vpack.c.b16 %v1369, %v1368
    %v1395 = vpack.c.b16 %v1371, %v1370
    %v1396 = vpack.c.b16 %v1373, %v1372
    %v1397 = vpack.c.b16 %v1375, %v1374
    %v1398 = vpack.c.b16 %v1377, %v1376
    %v1399 = vpack.c.b16 %v1379, %v1378
    %v1400 = vpack.c.b16 %v1381, %v1380
    %v1401 = vpack.c.b16 %v1383, %v1382
    %v1402 = vpack.c.b16 %v1385, %v1384
    %v1403 = vpack.c.b16 %v1387, %v1386
    %1420 = vmatprep.subr.bf16.mxu0 0
    %1421 = vmatpush1.bf16.msra.mxu0 %v1388
    %1422 = vmatprep.subr.bf16.mxu0 0
    %1423 = vmatpush1.bf16.msra.mxu0 %v1389
    %1424 = vmatprep.subr.bf16.mxu0 0
    %1425 = vmatpush1.bf16.msra.mxu0 %v1390
    %1426 = vmatprep.subr.bf16.mxu0 0
    %1427 = vmatpush1.bf16.msra.mxu0 %v1391
    %1428 = vmatprep.subr.bf16.mxu0 0
    %1429 = vmatpush1.bf16.msra.mxu0 %v1392
    %1430 = vmatprep.subr.bf16.mxu0 0
    %1431 = vmatpush1.bf16.msra.mxu0 %v1393
    %1432 = vmatprep.subr.bf16.mxu0 0
    %1433 = vmatpush1.bf16.msra.mxu0 %v1394
    %1434 = vmatprep.subr.bf16.mxu0 0
    %1435 = vmatpush1.bf16.msra.mxu0 %v1395
    %1436 = vmatprep.subr.bf16.mxu0 0
    %1437 = vmatpush1.bf16.msra.mxu0 %v1396
    %1438 = vmatprep.subr.bf16.mxu0 0
    %1439 = vmatpush1.bf16.msra.mxu0 %v1397
    %1440 = vmatprep.subr.bf16.mxu0 0
    %1441 = vmatpush1.bf16.msra.mxu0 %v1398
    %1442 = vmatprep.subr.bf16.mxu0 0
    %1443 = vmatpush1.bf16.msra.mxu0 %v1399
    %1444 = vmatprep.subr.bf16.mxu0 0
    %1445 = vmatpush1.bf16.msra.mxu0 %v1400
    %1446 = vmatprep.subr.bf16.mxu0 0
    %1447 = vmatpush1.bf16.msra.mxu0 %v1401
    %1448 = vmatprep.subr.bf16.mxu0 0
    %1449 = vmatpush1.bf16.msra.mxu0 %v1402
    %1450 = vmatprep.subr.bf16.mxu0 0
    %1451 = vmatpush1.bf16.msra.mxu0 %v1403
    %1452 = vmatprep.mubr.bf16.mxu0 %v1284
    %1453 = vmatmul.mubr.bf16.gmra.mrb[0].mxu0 %v1283
    %v1454 = vpop.f32.mrb[0].mxu0
    %v1455 = vadd.f32 %v1322, %v1454
    %v1456 = vpop.f32.mrb[0].mxu0
    %v1457 = vpop.f32.mrb[0].mxu0
    %v1458 = vadd.f32 %v1322, %v1457
    %v1459 = vpop.f32.mrb[0].mxu0
    %1460 = vdwg.mxu0
    %v1461 = vpack.c.bf16 %v1458, %v1455
    %v1463 = vcombine.high %v1461, %v1461
    %v1465 = vunpack.c.l.s4 1966171168
    %v1466 = vunpack.c.0.s8 %v1465
    %v1467 = vlaneseq
    %v1468 = vshrl.u32 %v1467, 7
    %v1469 = vsub.s32 %v1466, %v1468
    %v1470 = vrot.slane %v1461, %v1469
    %v1472 = vunpack.c.l.s4 1966171168
    %v1473 = vunpack.c.0.s8 %v1472
    %v1474 = vlaneseq
    %v1475 = vshrl.u32 %v1474, 7
    %v1476 = vsub.s32 %v1473, %v1475
    %v1477 = vrot.slane %v1463, %v1476
    %v1478 = vcombine.high %v1470, %v1470
    %v1479 = vcombine.high %v1477, %v1477
    %v1481 = vunpack.c.l.s4 1966171168
    %v1482 = vunpack.c.0.s8 %v1481
    %v1483 = vlaneseq
    %v1484 = vshrl.u32 %v1483, 7
    %v1485 = vsub.s32 %v1482, %v1484
    %v1486 = vrot.slane %v1470, %v1485
    %v1488 = vunpack.c.l.s4 1966171168
    %v1489 = vunpack.c.0.s8 %v1488
    %v1490 = vlaneseq
    %v1491 = vshrl.u32 %v1490, 7
    %v1492 = vsub.s32 %v1489, %v1491
    %v1493 = vrot.slane %v1477, %v1492
    %v1495 = vunpack.c.l.s4 1966171168
    %v1496 = vunpack.c.0.s8 %v1495
    %v1497 = vlaneseq
    %v1498 = vshrl.u32 %v1497, 7
    %v1499 = vsub.s32 %v1496, %v1498
    %v1500 = vrot.slane %v1478, %v1499
    %v1502 = vunpack.c.l.s4 1966171168
    %v1503 = vunpack.c.0.s8 %v1502
    %v1504 = vlaneseq
    %v1505 = vshrl.u32 %v1504, 7
    %v1506 = vsub.s32 %v1503, %v1505
    %v1507 = vrot.slane %v1479, %v1506
    %v1508 = vcombine.high %v1486, %v1486
    %v1509 = vcombine.high %v1493, %v1493
    %v1510 = vcombine.high %v1500, %v1500
    %v1511 = vcombine.high %v1507, %v1507
    %1520 = vst [vmem:[#allocation6] sm:$0x1] %v1486
    %1521 = vst [vmem:[#allocation6 + $0x1] sm:$0x1] %v1500
    %1522 = vst [vmem:[#allocation6 + $0x2] sm:$0x1] %v1508
    %1523 = vst [vmem:[#allocation6 + $0x3] sm:$0x1] %v1510
    %1524 = vst [vmem:[#allocation6 + $0x4] sm:$0x1] %v1493
    %1525 = vst [vmem:[#allocation6 + $0x5] sm:$0x1] %v1507
    %1526 = vst [vmem:[#allocation6 + $0x6] sm:$0x1] %v1509
    %1527 = vst [vmem:[#allocation6 + $0x7] sm:$0x1] %v1511
    // Predicated region
    $region38: #{mlp_forward.1} parent=1 // pred_check
      _
    $region39: #{mlp_forward.1} parent=1 // pred_check_branch
      %1529 = sbr.rel (0) target = $region41
    $region40: #{mlp_forward.1} parent=1 // pred_region
      // Predicated region
      $region42: #{mlp_forward.1} parent=40 // pred_check
        _
      $region43: #{mlp_forward.1} parent=40 // pred_check_branch
        %1531 = sbr.rel (0) target = $region45
      $region44: #{mlp_forward.1} parent=40 // pred_region
        // Predicated region
        $region46: #{mlp_forward.1} parent=44 // pred_check
          _
        $region47: #{mlp_forward.1} parent=44 // pred_check_branch
          %1533 = sbr.rel target = $region49
        $region48: #{mlp_forward.1} parent=44 // pred_region
          // Predicated region
          $region61: #{mlp_forward.1} parent=48 // pred_check
            _
          $region62: #{mlp_forward.1} parent=48 // pred_check_branch
            %1548 = sbr.rel (0) target = $region64
          $region63: #{mlp_forward.1} parent=48 // pred_region
            loop: start=0, step=1, limit=1
            $region65: #{mlp_forward.1} parent=63 // loop_pre_header
              _
            $region66: #{mlp_forward.1} parent=63 // loop_header
              %s1551 = sphi 0, %s1555
              %p1552 = scmp.ge.s32.totalorder %s1551, 1
              %s1556 = sphi [#allocation6], [#allocation6]
              %s1557 = sphi %s7, %s7
            $region67: #{mlp_forward.1} parent=63 // loop_header_branch
              %1554 = sbr.rel (%p1552) target = $region71
            $region68: #{mlp_forward.1} parent=63 // loop_body
              %v1558 = vld [vmem:[%s1556] sm:$0x1]
              %1559 = vst [vmem:[%s1557] sm:$0x1] %v1558
            $region69: #{mlp_forward.1} parent=63 // loop_footer
              %s1555 = sadd.s32 1, %s1551
            $region70: #{mlp_forward.1} parent=63 // loop_footer_branch
              %1550 = sbr.rel target = $region66
            $region71: #{mlp_forward.1} parent=63 // loop_exit
              _
          $region64: #{mlp_forward.1} parent=48 // pred_fallthru
            _
        $region49: #{mlp_forward.1} parent=44 // pred_fallthru
          _
        // Predicated region
        $region50: #{mlp_forward.1} parent=44 // pred_check
          _
        $region51: #{mlp_forward.1} parent=44 // pred_check_branch
          %1535 = sbr.rel (0) target = $region53
        $region52: #{mlp_forward.1} parent=44 // pred_region
          loop: start=0, step=1, limit=1
          $region54: #{mlp_forward.1} parent=52 // loop_pre_header
            _
          $region55: #{mlp_forward.1} parent=52 // loop_header
            %s1538 = sphi 0, %s1542
            %p1539 = scmp.ge.s32.totalorder %s1538, 1
            %s1543 = sphi [#allocation6], [#allocation6]
            %s1544 = sphi %s7, %s7
          $region56: #{mlp_forward.1} parent=52 // loop_header_branch
            %1541 = sbr.rel (%p1539) target = $region60
          $region57: #{mlp_forward.1} parent=52 // loop_body
            %v1545 = vld [vmem:[%s1543] sm:$0x1]
            %1546 = vst [vmem:[%s1544] sm:$0x1] %v1545
          $region58: #{mlp_forward.1} parent=52 // loop_footer
            %s1542 = sadd.s32 1, %s1538
          $region59: #{mlp_forward.1} parent=52 // loop_footer_branch
            %1537 = sbr.rel target = $region55
          $region60: #{mlp_forward.1} parent=52 // loop_exit
            _
        $region53: #{mlp_forward.1} parent=44 // pred_fallthru
          _
      $region45: #{mlp_forward.1} parent=40 // pred_fallthru
        _
      %1560 = vnop
    $region41: #{mlp_forward.1} parent=1 // pred_fallthru
      _
    // Predicated region
    $region72: #{mlp_forward.1} parent=1 // pred_check
      _
    $region73: #{mlp_forward.1} parent=1 // pred_check_branch
      %1562 = sbr.rel (0) target = $region75
    $region74: #{mlp_forward.1} parent=1 // pred_region
      _
    $region75: #{mlp_forward.1} parent=1 // pred_fallthru
      _
    %1563 = vsyncpa [#allocation3], 1
    %1564 = vsyncpa [#allocation5], 1

</llo_original>
